<compile_context>
chip_gen: v7x
topology: tpu7x:2x2x1
jax: 0.10.0
libtpu: 0.0.40
codegen_flags: <defaults>
</compile_context>

<pallas_src>
import functools

import jax
import jax.numpy as jnp
from jax import lax
from jax.experimental import pallas as pl
from jax.experimental.pallas import tpu as pltpu

LANES = 128
SUBLANES = 8
MAX_TILE_ROWS = 2048   # f32 tile = 1 MiB per input; 4 MiB double-buffered total
NUM_SPLITS = 2         # leading "parallel" grid axis (both TensorCores on v7x)


def _cdiv(a, b):
    return -(-a // b)


def _round_up(a, b):
    return _cdiv(a, b) * b


def _focal_loss_kernel(pred_ref, target_ref, out_ref, acc_ref, *,
                       alpha, gamma, tile_rows, steps_per_split,
                       n_full_rows, rem, needs_mask):
    j = pl.program_id(1)

    @pl.when(j == 0)
    def _():
        acc_ref[...] = jnp.zeros_like(acc_ref)

    x = pred_ref[...].astype(jnp.float32)      # (tile_rows, 128) logits
    t = target_ref[...].astype(jnp.float32)    # (tile_rows, 128) values {0,1}
    is_pos = t > 0.5

    p = jax.nn.sigmoid(x)
    probs = jnp.where(is_pos, p, 1.0 - p)
    probs = jnp.clip(probs, 0.0001, 1.0)
    log_p = jnp.log(probs)
    q = 1.0 - probs

    # Integer gamma -> unrolled multiplies on the VPU (avoid jnp.power's
    # exp/log pair on the single-slot EUP).  Falls back to power otherwise.
    if float(gamma) == float(int(gamma)) and 0 <= int(gamma) <= 8:
        gi = int(gamma)
        pow_q = jnp.ones_like(q) if gi == 0 else q
        for _ in range(max(gi - 1, 0)):
            pow_q = pow_q * q
    else:
        pow_q = jnp.power(q, jnp.float32(gamma))

    alpha_t = jnp.where(is_pos, jnp.float32(alpha), jnp.float32(1.0 - alpha))
    batch_loss = -alpha_t * pow_q * log_p

    if needs_mask:
        # Zero out elements beyond the flattened length: covers both the
        # 128-lane remainder and blocks that overrun the row count.  Garbage
        # in edge blocks is safe: it only sits in the unselected branch.
        start_row = (pl.program_id(0) * steps_per_split + j) * tile_rows
        row = start_row + lax.broadcasted_iota(jnp.int32, batch_loss.shape, 0)
        valid = row < n_full_rows
        if rem:
            lane = lax.broadcasted_iota(jnp.int32, batch_loss.shape, 1)
            valid = valid | ((row == n_full_rows) & (lane < rem))
        batch_loss = jnp.where(valid, batch_loss, 0.0)

    # Lane-parallel partial sums: reduce only along the major axis (pure
    # sublane-aligned vreg adds); the single cross-lane reduction is done
    # once in the wrapper.
    acc_ref[...] += jnp.sum(
        batch_loss.reshape(tile_rows // SUBLANES, SUBLANES, LANES), axis=0)

    @pl.when(j == pl.num_programs(1) - 1)
    def _():
        out_ref[...] = acc_ref[...].reshape(1, SUBLANES, LANES)


def focal_loss(pred, target, *, alpha=0.25, gamma=2, size_average=True,
               _max_tile_rows=MAX_TILE_ROWS):
    """Binary focal loss matching the PyTorch FocalLoss.forward semantics."""
    pred_flat = jnp.reshape(pred, (-1,)).astype(jnp.float32)
    target_flat = jnp.reshape(target, (-1,)).astype(jnp.float32)
    n = int(pred_flat.shape[0])

    rows = max(_cdiv(n, LANES), 1)
    rows_p = _round_up(rows, SUBLANES)
    padded_len = rows_p * LANES
    if padded_len != n:
        # Only sizes that are not a multiple of 1024 pay this copy; padded
        # values are masked to exactly zero loss inside the kernel.
        pred_flat = jnp.pad(pred_flat, (0, padded_len - n))
        target_flat = jnp.pad(target_flat, (0, padded_len - n))
    pred2d = pred_flat.reshape(rows_p, LANES)
    target2d = target_flat.reshape(rows_p, LANES)

    rows_per_split = _cdiv(rows_p, NUM_SPLITS)
    tile_rows = min(int(_max_tile_rows), _round_up(rows_per_split, SUBLANES))
    tile_rows = max(_round_up(tile_rows, SUBLANES), SUBLANES)
    steps_per_split = _cdiv(rows_per_split, tile_rows)
    covered_rows = NUM_SPLITS * steps_per_split * tile_rows
    needs_mask = covered_rows * LANES != n
    max_block = _cdiv(rows_p, tile_rows) - 1  # last block with valid data

    kernel = functools.partial(
        _focal_loss_kernel, alpha=float(alpha), gamma=gamma,
        tile_rows=tile_rows, steps_per_split=steps_per_split,
        n_full_rows=n // LANES, rem=n % LANES, needs_mask=needs_mask)

    def in_map(i, j):
        # Clamp so a split whose blocks lie entirely past the valid rows still
        # issues an in-bounds DMA; its contribution is zeroed by the mask.
        return (jnp.minimum(i * steps_per_split + j, max_block), 0)

    partials = pl.pallas_call(
        kernel,
        out_shape=jax.ShapeDtypeStruct((NUM_SPLITS, SUBLANES, LANES),
                                       jnp.float32),
        grid_spec=pltpu.PrefetchScalarGridSpec(
            num_scalar_prefetch=0,
            grid=(NUM_SPLITS, steps_per_split),
            in_specs=[
                pl.BlockSpec((tile_rows, LANES), in_map),
                pl.BlockSpec((tile_rows, LANES), in_map),
            ],
            out_specs=pl.BlockSpec((1, SUBLANES, LANES),
                                   lambda i, j: (i, 0, 0)),
            scratch_shapes=[pltpu.VMEM((SUBLANES, LANES), jnp.float32)],
        ),
        compiler_params=pltpu.CompilerParams(
            dimension_semantics=("parallel", "arbitrary")),
    )(pred2d, target2d)

    total = jnp.sum(partials)
    if size_average:
        return total / jnp.float32(n)
    return total


def _reference_focal_loss(pred, target, alpha=0.25, gamma=2,
                          size_average=True):
    """Pure-JAX re-implementation of the PyTorch forward for verification."""
    p = jax.nn.sigmoid(jnp.reshape(pred, (-1,)).astype(jnp.float32))
    t = jnp.reshape(target, (-1,)).astype(jnp.float32)
    probs = jnp.where(t > 0.5, p, 1.0 - p)
    probs = jnp.clip(probs, 0.0001, 1.0)
    alpha_t = jnp.where(t > 0.5, alpha, 1.0 - alpha)
    batch_loss = -alpha_t * (1.0 - probs) ** gamma * jnp.log(probs)
    return batch_loss.mean() if size_average else batch_loss.sum()


if __name__ == "__main__":
    key = jax.random.PRNGKey(0)
    k1, k2, k3, k4, k5, k6 = jax.random.split(key, 6)

    # Small NCHW-like logits; binary target in {0, 1}.  numel = 2048
    # (multiple of 1024 -> zero-copy path, no in-kernel mask).
    x = jax.random.normal(k1, (2, 4, 16, 16), dtype=jnp.float32)
    y = (jax.random.uniform(k2, (2, 4, 16, 16)) > 0.5).astype(jnp.float32)
    loss = jax.block_until_ready(
        focal_loss(x, y, alpha=0.25, gamma=2, size_average=True))
    ref = _reference_focal_loss(x, y, alpha=0.25, gamma=2, size_average=True)
    assert jnp.allclose(loss, ref, rtol=1e-5, atol=1e-6), (loss, ref)

    # Force multiple reduction steps per split (small tile cap) and exercise
    # size_average=False.
    x2 = jax.random.normal(k3, (4, 4, 64, 64), dtype=jnp.float32)
    y2 = (jax.random.uniform(k4, (4, 4, 64, 64)) > 0.5).astype(jnp.float32)
    loss2 = jax.block_until_ready(
        focal_loss(x2, y2, alpha=0.25, gamma=2, size_average=False,
                   _max_tile_rows=64))
    ref2 = _reference_focal_loss(x2, y2, alpha=0.25, gamma=2,
                                 size_average=False)
    assert jnp.allclose(loss2, ref2, rtol=1e-4, atol=1e-4), (loss2, ref2)

    # Ragged size (numel = 1155, not a multiple of 1024): exercises the pad
    # fallback plus the in-kernel row/lane validity mask.
    x3 = jax.random.normal(k5, (3, 5, 7, 11), dtype=jnp.float32)
    y3 = (jax.random.uniform(k6, (3, 5, 7, 11)) > 0.5).astype(jnp.float32)
    loss3 = jax.block_until_ready(
        focal_loss(x3, y3, alpha=0.25, gamma=2, size_average=True))
    ref3 = _reference_focal_loss(x3, y3, alpha=0.25, gamma=2,
                                 size_average=True)
    assert jnp.allclose(loss3, ref3, rtol=1e-5, atol=1e-6), (loss3, ref3)

    print("KERNEL_OK")
</pallas_src>

<mosaic_0001>
module attributes {stable_mosaic.version = 11 : i64} {
  func.func @_focal_loss_kernel(%arg0: i32, %arg1: i32, %arg2: memref<8x128xf32, #tpu.memory_space<vmem>>, %arg3: memref<8x128xf32, #tpu.memory_space<vmem>>, %arg4: memref<1x8x128xf32, #tpu.memory_space<vmem>>, %arg5: memref<8x128xf32, #tpu.memory_space<vmem>>) attributes {dimension_semantics = [#tpu.dimension_semantics<parallel>, #tpu.dimension_semantics<arbitrary>], iteration_bounds = array<i64: 2, 1>, scalar_prefetch = 0 : i64, scratch_operands = 1 : i64, tpu.core_type = #tpu.core_type<tc>, window_params = [{transform_indices = @transform_0, window_bounds = array<i64: 8, 128>}, {transform_indices = @transform_1, window_bounds = array<i64: 8, 128>}, {transform_indices = @transform_2, window_bounds = array<i64: 1, 8, 128>}]} {
    %c0_i32 = arith.constant 0 : i32
    %0 = arith.cmpi eq, %arg1, %c0_i32 : i32
    %1 = arith.extui %0 : i1 to i32
    %c0_i32_0 = arith.constant 0 : i32
    %2 = arith.cmpi ne, %1, %c0_i32_0 : i32
    scf.if %2 {
      %cst_19 = arith.constant 0.000000e+00 : f32
      %38 = vector.broadcast %cst_19 : f32 to vector<8x128xf32>
      %c0_20 = arith.constant 0 : index
      %c0_21 = arith.constant 0 : index
      %39 = vector.load %arg5[%c0_20, %c0_21] : memref<8x128xf32, #tpu.memory_space<vmem>>, vector<8x128xf32>
      tpu.vector_store %arg5[%c0_20, %c0_21], %38 {strides = array<i32>} : memref<8x128xf32, #tpu.memory_space<vmem>>, vector<8x128xf32>,
    } else {
    }
    %c0 = arith.constant 0 : index
    %c0_1 = arith.constant 0 : index
    %3 = vector.load %arg2[%c0, %c0_1] : memref<8x128xf32, #tpu.memory_space<vmem>>, vector<8x128xf32>
    %c0_2 = arith.constant 0 : index
    %c0_3 = arith.constant 0 : index
    %4 = vector.load %arg3[%c0_2, %c0_3] : memref<8x128xf32, #tpu.memory_space<vmem>>, vector<8x128xf32>
    %cst = arith.constant 5.000000e-01 : f32
    %5 = vector.broadcast %cst : f32 to vector<8x128xf32>
    %6 = arith.cmpf ogt, %4, %5 : vector<8x128xf32>
    %7 = arith.negf %3 : vector<8x128xf32>
    %8 = math.exp %7 : vector<8x128xf32>
    %cst_4 = arith.constant 1.000000e+00 : f32
    %9 = vector.broadcast %cst_4 : f32 to vector<8x128xf32>
    %10 = arith.addf %9, %8 : vector<8x128xf32>
    %11 = arith.divf %9, %10 : vector<8x128xf32>
    %cst_5 = arith.constant 1.000000e+00 : f32
    %12 = vector.broadcast %cst_5 : f32 to vector<8x128xf32>
    %13 = arith.subf %12, %11 : vector<8x128xf32>
    %14 = arith.select %6, %11, %13 : vector<8x128xi1>, vector<8x128xf32>
    %cst_6 = arith.constant 9.99999974E-5 : f32
    %cst_7 = arith.constant 1.000000e+00 : f32
    %15 = vector.broadcast %cst_6 : f32 to vector<8x128xf32>
    %16 = arith.maximumf %15, %14 : vector<8x128xf32>
    %17 = vector.broadcast %cst_7 : f32 to vector<8x128xf32>
    %18 = arith.minimumf %17, %16 : vector<8x128xf32>
    %19 = math.log %18 : vector<8x128xf32>
    %cst_8 = arith.constant 1.000000e+00 : f32
    %20 = vector.broadcast %cst_8 : f32 to vector<8x128xf32>
    %21 = arith.subf %20, %18 : vector<8x128xf32>
    %22 = arith.mulf %21, %21 : vector<8x128xf32>
    %cst_9 = arith.constant 2.500000e-01 : f32
    %cst_10 = arith.constant 7.500000e-01 : f32
    %23 = vector.broadcast %cst_9 : f32 to vector<8x128xf32>
    %24 = vector.broadcast %cst_10 : f32 to vector<8x128xf32>
    %25 = arith.select %6, %23, %24 : vector<8x128xi1>, vector<8x128xf32>
    %cst_11 = arith.constant 0.000000e+00 : f32
    %26 = vector.broadcast %cst_11 : f32 to vector<8x128xf32>
    %27 = arith.subf %26, %25 : vector<8x128xf32>
    %28 = arith.mulf %27, %22 : vector<8x128xf32>
    %29 = arith.mulf %28, %19 : vector<8x128xf32>
    %c0_12 = arith.constant 0 : index
    %c0_13 = arith.constant 0 : index
    %30 = vector.load %arg5[%c0_12, %c0_13] : memref<8x128xf32, #tpu.memory_space<vmem>>, vector<8x128xf32>
    %31 = vector.shape_cast %29 : vector<8x128xf32> to vector<1x8x128xf32>
    %cst_14 = arith.constant dense<0.000000e+00> : vector<8x128xf32>
    %32 = vector.multi_reduction <add>, %31, %cst_14 [0] : vector<1x8x128xf32> to vector<8x128xf32>
    %33 = arith.addf %30, %32 : vector<8x128xf32>
    %c0_15 = arith.constant 0 : index
    %c0_16 = arith.constant 0 : index
    %34 = vector.load %arg5[%c0_15, %c0_16] : memref<8x128xf32, #tpu.memory_space<vmem>>, vector<8x128xf32>
    tpu.vector_store %arg5[%c0_15, %c0_16], %33 {strides = array<i32>} : memref<8x128xf32, #tpu.memory_space<vmem>>, vector<8x128xf32>,
    %c0_i32_17 = arith.constant 0 : i32
    %35 = arith.cmpi eq, %arg1, %c0_i32_17 : i32
    %36 = arith.extui %35 : i1 to i32
    %c0_i32_18 = arith.constant 0 : i32
    %37 = arith.cmpi ne, %36, %c0_i32_18 : i32
    scf.if %37 {
      %c0_19 = arith.constant 0 : index
      %c0_20 = arith.constant 0 : index
      %38 = vector.load %arg5[%c0_19, %c0_20] : memref<8x128xf32, #tpu.memory_space<vmem>>, vector<8x128xf32>
      %39 = vector.shape_cast %38 : vector<8x128xf32> to vector<1x8x128xf32>
      %c0_21 = arith.constant 0 : index
      %c0_22 = arith.constant 0 : index
      %c0_23 = arith.constant 0 : index
      %40 = vector.load %arg4[%c0_21, %c0_22, %c0_23] : memref<1x8x128xf32, #tpu.memory_space<vmem>>, vector<1x8x128xf32>
      tpu.vector_store %arg4[%c0_21, %c0_22, %c0_23], %39 {strides = array<i32>} : memref<1x8x128xf32, #tpu.memory_space<vmem>>, vector<1x8x128xf32>,
    } else {
    }
    return
  }
  func.func @transform_0(%arg0: i32, %arg1: i32) -> (i32, i32) {
    %c1_i32 = arith.constant 1 : i32
    %0 = arith.muli %arg0, %c1_i32 : i32
    %1 = arith.addi %0, %arg1 : i32
    %c1_i32_0 = arith.constant 1 : i32
    %2 = arith.minsi %1, %c1_i32_0 : i32
    %c0_i32 = arith.constant 0 : i32
    %c0_i32_1 = arith.constant 0 : i32
    return %2, %c0_i32 : i32, i32
  }
  func.func @transform_1(%arg0: i32, %arg1: i32) -> (i32, i32) {
    %c1_i32 = arith.constant 1 : i32
    %0 = arith.muli %arg0, %c1_i32 : i32
    %1 = arith.addi %0, %arg1 : i32
    %c1_i32_0 = arith.constant 1 : i32
    %2 = arith.minsi %1, %c1_i32_0 : i32
    %c0_i32 = arith.constant 0 : i32
    %c0_i32_1 = arith.constant 0 : i32
    return %2, %c0_i32 : i32, i32
  }
  func.func @transform_2(%arg0: i32, %arg1: i32) -> (i32, i32, i32) {
    %c0_i32 = arith.constant 0 : i32
    %c0_i32_0 = arith.constant 0 : i32
    %c0_i32_1 = arith.constant 0 : i32
    return %arg0, %c0_i32, %c0_i32_0 : i32, i32, i32
  }
}

</mosaic_0001>

<llo_original>
// kernel: tpu_custom_call.1
$region0: #{tpu_custom_call.1}
  #allocation0 [shape = 'u32[]', space=smem, size = 0x4, offset = 0x4, fixed_abs, tag = 'smem constant byte address 0x4 - core index']
  #allocation1 [shape = 'u32[144,128]{1,0:T(1,128)}', space=vmem, size = 0x12000, scoped, tag = 'internal scratch']
  #allocation2 [shape = 'f32[8,128]{1,0:T(8,128)}', space=vmem, size = 0x1000, scoped, tag = 'scratch operand']
  %s0 = inlined_call_operand.hbm [shape: f32[16,128], index: 0, kind: input, shape index: {}]
  %s1 = inlined_call_operand.hbm [shape: f32[16,128], index: 1, kind: input, shape index: {}]
  %s2 = inlined_call_operand.hbm [shape: f32[2,8,128], index: 2, kind: output, shape index: {}]
  %s3 = sld [smem:[#allocation0]]
  $region57: #{tpu_custom_call.1} parent=0
    _
  %s5 = ssub.s32 1, %s3
  %s6 = scalar_select 0, %s5, %s3
  $region1: #{tpu_custom_call.1} parent=0
    #allocation3 [shape = 'u8[8192]{0}', space=vmem, size = 0x2000, scoped, tag = 'input window, operand 0']
    #allocation4 [shape = 's32[2]{0}', space=sflag, size = 0x8, scoped, tag = 'scoped memory for tpu_custom_call.1']
    #allocation5 [shape = 's32[2]{0}', space=sflag, size = 0x8, scoped, tag = 'scoped memory for tpu_custom_call.1']
    #allocation6 [shape = 'u8[8192]{0}', space=vmem, size = 0x2000, scoped, tag = 'input window, operand 1']
    #allocation7 [shape = 's32[2]{0}', space=sflag, size = 0x8, scoped, tag = 'scoped memory for tpu_custom_call.1']
    #allocation8 [shape = 'u8[8192]{0}', space=vmem, size = 0x2000, scoped, tag = 'output window, operand 0']
    %7 = vsyncpa [#allocation4], 0
    %s8 = scalar_lea.sflag [#allocation4], 1
    %9 = vsyncpa %s8, 0
    %10 = vsyncpa [#allocation7], 0
    %s11 = scalar_lea.sflag [#allocation7], 1
    %12 = vsyncpa %s11, 0
    %13 = vsyncpa [#allocation5], 0
    %s14 = scalar_lea.sflag [#allocation5], 1
    %15 = vsyncpa %s14, 0
    loop: start=0, step=1, limit=4
    $region2: #{tpu_custom_call.1} parent=1 // loop_pre_header
      _
    $region3: #{tpu_custom_call.1} parent=1 // loop_header
      %s17 = sphi 0, %s21
      %p18 = scmp.ge.s32.totalorder %s17, 4
      %s24 = sphi 0, %s36
      %s25 = sphi 0, %s32
      %s26 = sphi 0, %s24
      %s27 = sphi 0, %s25
      %s28 = sphi 0, %s26
      %s29 = sphi 0, %s27
      %s45 = sphi 0, %s47
      %s48 = sphi 0, %s45
      %s49 = sphi 0, %s48
      %s65 = sphi 0, %s49
      %s77 = sphi 0, %s79
      %s80 = sphi 0, %s77
      %s81 = sphi 0, %s80
      %s97 = sphi 0, %s81
      %s103 = sphi 0, %s105
      %s106 = sphi 0, %s103
      %s107 = sphi 0, %s106
      %s123 = sphi 0, %s107
    $region4: #{tpu_custom_call.1} parent=1 // loop_header_branch
      %20 = sbr.rel (%p18) target = $region8
    $region5: #{tpu_custom_call.1} parent=1 // loop_body
      %s22 = ssub.s32 %s17, 1
      %s23 = ssub.s32 %s17, 2
      %s30 = sadd.s32 1, %s25
      %p31 = scmp.ge.s32.totalorder %s30, 1
      %s32 = scalar_select %p31, 0, %s30
      %s33 = sadd.s32 1, %s24
      %s34 = scalar_select %p31, %s33, %s24
      %p35 = scmp.ge.s32.totalorder %s34, 2
      %s36 = scalar_select %p35, 0, %s34
      %s37 = sadd.s32 %s24, %s25
      %p38 = scmp.lt.s32.totalorder %s37, 1
      %s39 = scalar_select %p38, %s37, 1
      %s40 = sadd.s32 %s36, %s32
      %p41 = scmp.lt.s32.totalorder %s40, 1
      %s42 = scalar_select %p41, %s40, 1
      %s43 = ssub.s32 %s39, %s42
      %p44 = scmp.eq.s32.totalorder %s43, 0
      %s46 = sadd.s32 %s45, 1
      %s47 = scalar_select %p44, %s45, %s46
      %p50 = pneg %p44
      %p51 = scmp.eq.s32.totalorder %s17, 1
      %p52 = por %p50, %p51
      %p53 = scmp.ne.s32.totalorder %s45, %s48
      %p54 = scmp.eq.s32.totalorder %s17, 0
      %p55 = por %p53, %p54
      %p56 = scmp.ne.s32.totalorder %s45, %s48
      %p57 = scmp.eq.s32.totalorder %s22, 1
      %p58 = por %p56, %p57
      %p59 = scmp.ne.s32.totalorder %s48, %s49
      %p60 = scmp.eq.s32.totalorder %s22, 0
      %p61 = por %p59, %p60
      %p62 = scmp.ne.s32.totalorder %s48, %s49
      %p63 = scmp.eq.s32.totalorder %s23, 1
      %p64 = por %p62, %p63
      %p66 = scmp.ne.s32.totalorder %s49, %s65
      %p67 = scmp.eq.s32.totalorder %s23, 0
      %p68 = por %p66, %p67
      %s69 = sadd.s32 %s24, %s25
      %p70 = scmp.lt.s32.totalorder %s69, 1
      %s71 = scalar_select %p70, %s69, 1
      %s72 = sadd.s32 %s36, %s32
      %p73 = scmp.lt.s32.totalorder %s72, 1
      %s74 = scalar_select %p73, %s72, 1
      %s75 = ssub.s32 %s71, %s74
      %p76 = scmp.eq.s32.totalorder %s75, 0
      %s78 = sadd.s32 %s77, 1
      %s79 = scalar_select %p76, %s77, %s78
      %p82 = pneg %p76
      %p83 = scmp.eq.s32.totalorder %s17, 1
      %p84 = por %p82, %p83
      %p85 = scmp.ne.s32.totalorder %s77, %s80
      %p86 = scmp.eq.s32.totalorder %s17, 0
      %p87 = por %p85, %p86
      %p88 = scmp.ne.s32.totalorder %s77, %s80
      %p89 = scmp.eq.s32.totalorder %s22, 1
      %p90 = por %p88, %p89
      %p91 = scmp.ne.s32.totalorder %s80, %s81
      %p92 = scmp.eq.s32.totalorder %s22, 0
      %p93 = por %p91, %p92
      %p94 = scmp.ne.s32.totalorder %s80, %s81
      %p95 = scmp.eq.s32.totalorder %s23, 1
      %p96 = por %p94, %p95
      %p98 = scmp.ne.s32.totalorder %s81, %s97
      %p99 = scmp.eq.s32.totalorder %s23, 0
      %p100 = por %p98, %p99
      %s101 = ssub.s32 %s24, %s36
      %p102 = scmp.eq.s32.totalorder %s101, 0
      %s104 = sadd.s32 %s103, 1
      %s105 = scalar_select %p102, %s103, %s104
      %p108 = pneg %p102
      %p109 = scmp.eq.s32.totalorder %s17, 1
      %p110 = por %p108, %p109
      %p111 = scmp.ne.s32.totalorder %s103, %s106
      %p112 = scmp.eq.s32.totalorder %s17, 0
      %p113 = por %p111, %p112
      %p114 = scmp.ne.s32.totalorder %s103, %s106
      %p115 = scmp.eq.s32.totalorder %s22, 1
      %p116 = por %p114, %p115
      %p117 = scmp.ne.s32.totalorder %s106, %s107
      %p118 = scmp.eq.s32.totalorder %s22, 0
      %p119 = por %p117, %p118
      %p120 = scmp.ne.s32.totalorder %s106, %s107
      %p121 = scmp.eq.s32.totalorder %s23, 1
      %p122 = por %p120, %p121
      %p124 = scmp.ne.s32.totalorder %s107, %s123
      %p125 = scmp.eq.s32.totalorder %s23, 0
      %p126 = por %p124, %p125
      %p127 = scmp.le.s32.totalorder 1, %s17
      %p128 = scmp.lt.s32.totalorder %s17, 3
      %p129 = pnand %p127, %p128
      %p130 = pneg %p129
      // Predicated region
      $region9: #{tpu_custom_call.1} parent=5 // pred_check
        _
      $region10: #{tpu_custom_call.1} parent=5 // pred_check_branch
        %132 = sbr.rel (%p129) target = $region12
      $region11: #{tpu_custom_call.1} parent=5 // pred_region
        %s133 = ssub.s32 %s17, 1
      $region12: #{tpu_custom_call.1} parent=5 // pred_fallthru
        _
      %p134 = scmp.lt.s32.totalorder %s17, 2
      // Predicated region
      $region13: #{tpu_custom_call.1} parent=5 // pred_check
        %p135 = pneg %p134
      $region14: #{tpu_custom_call.1} parent=5 // pred_check_branch
        %137 = sbr.rel (%p135) target = $region16
      $region15: #{tpu_custom_call.1} parent=5 // pred_region
        // Predicated region
        $region17: #{tpu_custom_call.1} parent=15 // pred_check
          %p138 = pneg %p55
        $region18: #{tpu_custom_call.1} parent=15 // pred_check_branch
          %140 = sbr.rel (%p138) target = $region20
        $region19: #{tpu_custom_call.1} parent=15 // pred_region
          %s141 = sand.u32 %s45, 1
          %s142 = scalar_lea.sflag [#allocation4], %s141
          %s143 = sand.u32 %s45, 1
          %s144 = smul.addr %s143, 8
          %s145 = scalar_lea.vmem [#allocation3], %s144
          %s146 = sadd.s32 %s24, %s25
          %p147 = scmp.lt.s32.totalorder %s146, 1
          %s148 = scalar_select %p147, %s146, 1
          %s150 = ssub.s32 128, 128
          %151 = vsyncadd %s142, %s150
          %s152 = smul.addr %s148, 128
          %s153 = scalar_lea.hbm %s0, %s152
          %s155 = sshll.u32 %s145, 4
          %s156 = int_to_ptr.vmem [resolvable:$true] %s155
          %158 = dma.hbm_to_vmem [thread:$0]  %s153, 128, %s156, %s142
        $region20: #{tpu_custom_call.1} parent=15 // pred_fallthru
          _
        // Predicated region
        $region21: #{tpu_custom_call.1} parent=15 // pred_check
          %p159 = pneg %p87
        $region22: #{tpu_custom_call.1} parent=15 // pred_check_branch
          %161 = sbr.rel (%p159) target = $region24
        $region23: #{tpu_custom_call.1} parent=15 // pred_region
          %s162 = sand.u32 %s77, 1
          %s163 = scalar_lea.sflag [#allocation7], %s162
          %s164 = sand.u32 %s77, 1
          %s165 = smul.addr %s164, 8
          %s166 = scalar_lea.vmem [#allocation6], %s165
          %s167 = sadd.s32 %s24, %s25
          %p168 = scmp.lt.s32.totalorder %s167, 1
          %s169 = scalar_select %p168, %s167, 1
          %s171 = ssub.s32 128, 128
          %172 = vsyncadd %s163, %s171
          %s173 = smul.addr %s169, 128
          %s174 = scalar_lea.hbm %s1, %s173
          %s176 = sshll.u32 %s166, 4
          %s177 = int_to_ptr.vmem [resolvable:$true] %s176
          %179 = dma.hbm_to_vmem [thread:$0]  %s174, 128, %s177, %s163
        $region24: #{tpu_custom_call.1} parent=15 // pred_fallthru
          _
      $region16: #{tpu_custom_call.1} parent=5 // pred_fallthru
        _
      %p180 = scmp.le.s32.totalorder 1, %s17
      %p181 = scmp.lt.s32.totalorder %s17, 3
      %p182 = pnand %p180, %p181
      %p183 = pneg %p182
      // Predicated region
      $region25: #{tpu_custom_call.1} parent=5 // pred_check
        _
      $region26: #{tpu_custom_call.1} parent=5 // pred_check_branch
        %185 = sbr.rel (%p182) target = $region28
      $region27: #{tpu_custom_call.1} parent=5 // pred_region
        %s186 = ssub.s32 %s17, 1
        %s187 = sand.u32 %s48, 1
        %s188 = scalar_lea.sflag [#allocation4], %s187
        %s189 = sand.u32 %s48, 1
        %s190 = smul.addr %s189, 8
        %s191 = scalar_lea.vmem [#allocation3], %s190
        // Predicated region
        $region29: #{tpu_custom_call.1} parent=27 // pred_check
          %p192 = pneg %p61
        $region30: #{tpu_custom_call.1} parent=27 // pred_check_branch
          %194 = sbr.rel (%p192) target = $region32
        $region31: #{tpu_custom_call.1} parent=27 // pred_region
          %195 = dma.done %s188, 128
        $region32: #{tpu_custom_call.1} parent=27 // pred_fallthru
          _
        %s196 = sand.u32 %s80, 1
        %s197 = scalar_lea.sflag [#allocation7], %s196
        %s198 = sand.u32 %s80, 1
        %s199 = smul.addr %s198, 8
        %s200 = scalar_lea.vmem [#allocation6], %s199
        // Predicated region
        $region33: #{tpu_custom_call.1} parent=27 // pred_check
          %p201 = pneg %p93
        $region34: #{tpu_custom_call.1} parent=27 // pred_check_branch
          %203 = sbr.rel (%p201) target = $region36
        $region35: #{tpu_custom_call.1} parent=27 // pred_region
          %204 = dma.done %s197, 128
        $region36: #{tpu_custom_call.1} parent=27 // pred_fallthru
          _
        %s205 = sand.u32 %s48, 1
        %s206 = scalar_lea.sflag [#allocation4], %s205
        %s207 = sand.u32 %s48, 1
        %s208 = smul.addr %s207, 8
        %s209 = scalar_lea.vmem [#allocation3], %s208
        %p210 = pneg %p61
        %p211 = pneg %p58
        %s212 = sand.u32 %s80, 1
        %s213 = scalar_lea.sflag [#allocation7], %s212
        %s214 = sand.u32 %s80, 1
        %s215 = smul.addr %s214, 8
        %s216 = scalar_lea.vmem [#allocation6], %s215
        %p217 = pneg %p93
        %p218 = pneg %p90
        %p219 = pneg %p119
        %p220 = pneg %p116
        %s221 = sand.u32 %s106, 1
        %s222 = scalar_lea.sflag [#allocation5], %s221
        %s223 = sand.u32 %s106, 1
        %s224 = smul.addr %s223, 8
        %s225 = scalar_lea.vmem [#allocation8], %s224
        %s226 = sadd.s32 %s26, %s27
        %p227 = scmp.lt.s32.totalorder %s226, 1
        %s228 = scalar_select %p227, %s226, 1
        %s229 = sadd.s32 %s26, %s27
        %p230 = scmp.lt.s32.totalorder %s229, 1
        %s231 = scalar_select %p230, %s229, 1
        %p232 = scmp.eq.s32.totalorder %s27, 0
        // Predicated region
        $region37: #{tpu_custom_call.1} parent=27 // pred_check
          %p233 = pneg %p232
        $region38: #{tpu_custom_call.1} parent=27 // pred_check_branch
          %235 = sbr.rel (%p233) target = $region40
        $region39: #{tpu_custom_call.1} parent=27 // pred_region
          %236 = vst [vmem:[#allocation2] sm:$0xff] 0.0
        $region40: #{tpu_custom_call.1} parent=27 // pred_fallthru
          _
        %v237 = vld [vmem:[%s191] sm:$0xff]
        %v238 = vld [vmem:[%s200] sm:$0xff]
        %vm239 = vcmp.gt.f32.partialorder %v238, 0.5
        %v240 = vxor.u32 %v237, 2147483648
        %v241 = vmul.f32 %v240, 1.442695
        %v242 = vpow.pop %v241
        %v243 = vadd.f32 %v242, 1.0
        %v244 = vrcp.pop %v243
        %v245 = vmul.f32 1.0, %v244
        %v246 = vsub.f32 1.0, %v245
        %v247 = vsel %vm239, %v245, %v246
        %v248 = vmax.f32 %v247, 0.0001
        %v249 = vmin.f32 %v248, 1.0
        %v250 = vlog2.pop %v249
        %v251 = vmul.f32 %v250, 0.6931472
        %v252 = vsub.f32 1.0, %v249
        %v253 = vmul.f32 %v252, %v252
        %v254 = vsel %vm239, 0.25, 0.75
        %v255 = vsub.f32 0.0, %v254
        %v256 = vmul.f32 %v255, %v253
        %v257 = vmul.f32 %v256, %v251
        %v258 = vld [vmem:[#allocation2] sm:$0xff]
        %v259 = vadd.f32 %v257, 0.0
        %v260 = vadd.f32 %v258, %v259
        %261 = vst [vmem:[#allocation2] sm:$0xff] %v260
        // Predicated region
        $region41: #{tpu_custom_call.1} parent=27 // pred_check
          %p262 = pneg %p232
        $region42: #{tpu_custom_call.1} parent=27 // pred_check_branch
          %264 = sbr.rel (%p262) target = $region44
        $region43: #{tpu_custom_call.1} parent=27 // pred_region
          %v265 = vld [vmem:[#allocation2] sm:$0xff]
          %266 = vst [vmem:[%s225] sm:$0xff] %v265
        $region44: #{tpu_custom_call.1} parent=27 // pred_fallthru
          _
        %s267 = sand.u32 %s106, 1
        %s268 = scalar_lea.sflag [#allocation5], %s267
        %s269 = sand.u32 %s106, 1
        %s270 = smul.addr %s269, 8
        %s271 = scalar_lea.vmem [#allocation8], %s270
        // Predicated region
        $region45: #{tpu_custom_call.1} parent=27 // pred_check
          %p272 = pneg %p116
        $region46: #{tpu_custom_call.1} parent=27 // pred_check_branch
          %274 = sbr.rel (%p272) target = $region48
        $region47: #{tpu_custom_call.1} parent=27 // pred_region
          %s276 = ssub.s32 128, 128
          %277 = vsyncadd %s268, %s276
          %s278 = smul.addr %s26, 128
          %s279 = scalar_lea.hbm %s2, %s278
          %s281 = sshll.u32 %s271, 4
          %s282 = int_to_ptr.vmem [resolvable:$true] %s281
          %284 = dma.vmem_to_hbm [thread:$0]  %s282, 128, %s279, %s268
        $region48: #{tpu_custom_call.1} parent=27 // pred_fallthru
          _
      $region28: #{tpu_custom_call.1} parent=5 // pred_fallthru
        _
      %p285 = scmp.le.s32.totalorder 2, %s17
      // Predicated region
      $region49: #{tpu_custom_call.1} parent=5 // pred_check
        %p286 = pneg %p285
      $region50: #{tpu_custom_call.1} parent=5 // pred_check_branch
        %288 = sbr.rel (%p286) target = $region52
      $region51: #{tpu_custom_call.1} parent=5 // pred_region
        %s289 = ssub.s32 %s17, 2
        // Predicated region
        $region53: #{tpu_custom_call.1} parent=51 // pred_check
          %p290 = pneg %p122
        $region54: #{tpu_custom_call.1} parent=51 // pred_check_branch
          %292 = sbr.rel (%p290) target = $region56
        $region55: #{tpu_custom_call.1} parent=51 // pred_region
          %s293 = sand.u32 %s107, 1
          %s294 = scalar_lea.sflag [#allocation5], %s293
          %s295 = sand.u32 %s107, 1
          %s296 = smul.addr %s295, 8
          %s297 = scalar_lea.vmem [#allocation8], %s296
          %298 = dma.done %s294, 128
        $region56: #{tpu_custom_call.1} parent=51 // pred_fallthru
          _
      $region52: #{tpu_custom_call.1} parent=5 // pred_fallthru
        _
    $region6: #{tpu_custom_call.1} parent=1 // loop_footer
      %s21 = sadd.s32 1, %s17
    $region7: #{tpu_custom_call.1} parent=1 // loop_footer_branch
      %16 = sbr.rel target = $region3
    $region8: #{tpu_custom_call.1} parent=1 // loop_exit
      _
    %299 = vsyncpa [#allocation4], 1
    %s300 = scalar_lea.sflag [#allocation4], 1
    %301 = vsyncpa %s300, 1
    %302 = vsyncpa [#allocation7], 1
    %s303 = scalar_lea.sflag [#allocation7], 1
    %304 = vsyncpa %s303, 1
    %305 = vsyncpa [#allocation5], 1
    %s306 = scalar_lea.sflag [#allocation5], 1
    %307 = vsyncpa %s306, 1

</llo_original>
